<compile_context>
chip_gen: v7x
topology: tpu7x:2x2x1
jax: 0.10.0
libtpu: 0.0.40
codegen_flags: <defaults>
</compile_context>

<pallas_src>
import jax
import jax.numpy as jnp
from jax import lax
from jax.experimental import pallas as pl
from jax.experimental.pallas import tpu as pltpu

LANES = 128
SUB_ROWS = 256                        # rows per inner fori_loop sub-chunk (32 f32 vregs)
VMEM_LIMIT_BYTES = 40 * 1024 * 1024   # safe: v5e/v6e have 128 MiB physical, v7x 64 MiB/TC


def _device_kind() -> str:
    try:
        return jax.devices()[0].device_kind.lower()
    except Exception:  # pragma: no cover - e.g. no devices during tracing tools
        return ""


def _make_kernel(sub_rows, row_tile, tiles_total, last_rows, guard_waste, ragged_last):
    """Build the kernel with all tiling decisions baked in statically."""

    def kernel(pred_ref, y_ref, partial_ref, acc_ref):
        i = pl.program_id(1)

        @pl.when(i == 0)
        def _init():
            acc_ref[...] = jnp.zeros_like(acc_ref)

        tile_linear = pl.program_id(0) * pl.num_programs(1) + i

        def accumulate(off, nrows):
            # nrows is static and a multiple of 8; off may be traced.
            p = pred_ref[pl.ds(off, nrows), :].astype(jnp.float32)
            t = y_ref[pl.ds(off, nrows), :].astype(jnp.float32)
            mu = jnp.minimum(jnp.exp(6.0 * (t - 3.0)) + 1.0, 5.0)
            d = t - p
            sq = mu * d * d
            # Fold (nrows,128) into the resident (8,128) accumulator: a stack of
            # native (8,128) vregs summed with plain VALU adds (no XLU per step).
            acc_ref[...] += sq.reshape(nrows // 8, 8, LANES).sum(axis=0)

        def block_body(total_rows):
            # total_rows is static (row_tile for full blocks, last_rows for the
            # ragged last block) -> only valid rows are ever read; no masking.
            ns = total_rows // sub_rows
            rr = total_rows - ns * sub_rows  # static remainder, multiple of 8
            if ns == 1 and rr == 0:
                accumulate(0, sub_rows)
            else:
                if ns > 0:
                    def loop_body(s, carry):
                        off = pl.multiple_of(s * sub_rows, sub_rows)
                        accumulate(off, sub_rows)
                        return carry
                    lax.fori_loop(0, ns, loop_body, 0, unroll=(ns <= 4))
                if rr:
                    accumulate(ns * sub_rows, rr)

        if ragged_last:
            @pl.when(tile_linear < tiles_total - 1)
            def _steady():
                block_body(row_tile)

            @pl.when(tile_linear == tiles_total - 1)
            def _ragged():
                block_body(last_rows)
        elif guard_waste:
            @pl.when(tile_linear < tiles_total)
            def _guarded():
                block_body(row_tile)
        else:
            block_body(row_tile)

        # Single cross-lane/sublane reduce + scalar store, once per shard.
        @pl.when(i == pl.num_programs(1) - 1)
        def _finalize():
            partial_ref[0, 0] = jnp.sum(acc_ref[...])

    return kernel


def scaled_mse_loss(pred, y):
    assert pred.shape == y.shape
    n_elems = pred.size

    flat_pred = pred.reshape(-1)     # free bitcast, native dtype (no astype copy)
    flat_y = y.reshape(-1)

    itemsizes = (jnp.dtype(pred.dtype).itemsize, jnp.dtype(y.dtype).itemsize)
    # Dtype-aware granularity: 8 rows for 4-byte, 16 for 2-byte, 32 for 1-byte.
    align_rows = max(8, 32 // min(itemsizes))
    chunk = align_rows * LANES

    n_main = (n_elems // chunk) * chunk

    # Ragged tail (< chunk elements): fold with plain jnp, no full-array pad copy.
    tail_sum = jnp.float32(0.0)
    if n_main < n_elems:
        tp = flat_pred[n_main:].astype(jnp.float32)
        ty = flat_y[n_main:].astype(jnp.float32)
        mu_t = jnp.minimum(jnp.exp(6.0 * (ty - 3.0)) + 1.0, 5.0)
        tail_sum = jnp.sum(mu_t * (ty - tp) ** 2)

    if n_main == 0:
        # Tiny input: nothing aligned to hand to the kernel.
        return tail_sum / jnp.float32(n_elems)

    rows = n_main // LANES
    if n_main != n_elems:
        flat_pred = flat_pred[:n_main]
        flat_y = flat_y[:n_main]
    pred2d = flat_pred.reshape(rows, LANES)
    y2d = flat_y.reshape(rows, LANES)

    # Generation-aware tile size (bytes per input block).
    kind = _device_kind()
    is_v5 = "v5" in kind
    is_v7 = ("v7" in kind) or ("tpu7" in kind.replace(" ", "").replace("-", ""))
    target_block_bytes = (2 if is_v5 else 4) * 1024 * 1024

    target_rows = (target_block_bytes // (LANES * max(itemsizes))) // align_rows * align_rows
    target_rows = max(target_rows, align_rows)
    row_tile = min(target_rows, rows)          # multiple of align_rows (>= 8)

    tiles_total = (rows + row_tile - 1) // row_tile
    last_rows = rows - (tiles_total - 1) * row_tile   # static, multiple of 8
    ragged_last = last_rows != row_tile

    # Shards: only v7x has 2 TensorCores worth streaming from.
    if is_v7 and tiles_total >= 2:
        shards = 2
        sem0 = pltpu.CORE_PARALLEL
    else:
        shards = 1
        sem0 = pltpu.PARALLEL
    tiles_per_shard = (tiles_total + shards - 1) // shards
    guard_waste = shards * tiles_per_shard != tiles_total

    sub_rows = min(SUB_ROWS, row_tile)         # multiple of 8

    def in_map(c, i):
        t = c * tiles_per_shard + i
        if guard_waste:
            # Keep clamped "waste" blocks in bounds; their accumulate is skipped.
            t = jnp.minimum(t, tiles_total - 1)
        return (t, 0)

    def out_map(c, i):
        del i
        return (c, 0)

    kernel = _make_kernel(sub_rows, row_tile, tiles_total, last_rows,
                          guard_waste, ragged_last)

    cost = pl.CostEstimate(
        flops=8 * n_main,
        transcendentals=n_main,
        bytes_accessed=n_main * sum(itemsizes) + shards * 4,
    )

    partials = pl.pallas_call(
        kernel,
        out_shape=jax.ShapeDtypeStruct((shards, 1), jnp.float32),
        grid_spec=pltpu.PrefetchScalarGridSpec(
            num_scalar_prefetch=0,
            grid=(shards, tiles_per_shard),
            in_specs=[
                pl.BlockSpec((row_tile, LANES), in_map),
                pl.BlockSpec((row_tile, LANES), in_map),
            ],
            out_specs=pl.BlockSpec((1, 1), out_map, memory_space=pltpu.SMEM),
            scratch_shapes=[pltpu.VMEM((8, LANES), jnp.float32)],
        ),
        compiler_params=pltpu.CompilerParams(
            dimension_semantics=(sem0, pltpu.ARBITRARY),
            vmem_limit_bytes=VMEM_LIMIT_BYTES,
        ),
        cost_estimate=cost,
    )(pred2d, y2d)

    return (jnp.sum(partials) + tail_sum) / jnp.float32(n_elems)


def scaled_mse_loss_ref(pred, y):
    pred = pred.astype(jnp.float32)
    y = y.astype(jnp.float32)
    mu = jnp.minimum(jnp.exp(6.0 * (y - 3.0)) + 1.0, 5.0)
    return jnp.mean(mu * (y - pred) ** 2)


if __name__ == "__main__":
    key = jax.random.PRNGKey(0)

    # Main check: small NCHW shapes matching the PyTorch module's convention.
    k1, k2, k3, k4, k5, k6 = jax.random.split(key, 6)
    B, C, H, W = 2, 4, 16, 16
    pred = jax.random.normal(k1, (B, C, H, W), dtype=jnp.float32)
    y = jax.random.normal(k2, (B, C, H, W), dtype=jnp.float32) + 2.5

    out = jax.block_until_ready(scaled_mse_loss(pred, y))
    ref = jax.block_until_ready(scaled_mse_loss_ref(pred, y))
    assert jnp.allclose(out, ref, rtol=1e-5, atol=1e-5), (out, ref)

    # Secondary check: exercises the fori_loop sub-chunking + remainder path.
    pred2 = jax.random.normal(k3, (4, 8, 64, 130), dtype=jnp.float32)
    y2 = jax.random.normal(k4, (4, 8, 64, 130), dtype=jnp.float32) + 2.5
    out2 = jax.block_until_ready(scaled_mse_loss(pred2, y2))
    ref2 = jax.block_until_ready(scaled_mse_loss_ref(pred2, y2))
    assert jnp.allclose(out2, ref2, rtol=1e-4, atol=1e-5), (out2, ref2)

    # Third check: unaligned element count -> kernel prefix + jnp tail path.
    pred3 = jax.random.normal(k5, (3, 4, 10, 13), dtype=jnp.float32)
    y3 = jax.random.normal(k6, (3, 4, 10, 13), dtype=jnp.float32) + 2.5
    out3 = jax.block_until_ready(scaled_mse_loss(pred3, y3))
    ref3 = jax.block_until_ready(scaled_mse_loss_ref(pred3, y3))
    assert jnp.allclose(out3, ref3, rtol=1e-4, atol=1e-5), (out3, ref3)

    print("KERNEL_OK")
</pallas_src>

<mosaic_0001>
module attributes {stable_mosaic.version = 11 : i64} {
  func.func @kernel(%arg0: i32, %arg1: i32, %arg2: memref<16x128xf32, #tpu.memory_space<vmem>>, %arg3: memref<16x128xf32, #tpu.memory_space<vmem>>, %arg4: memref<1x1xf32, #tpu.memory_space<smem>>, %arg5: memref<8x128xf32, #tpu.memory_space<vmem>>) attributes {dimension_semantics = [#tpu.dimension_semantics<parallel>, #tpu.dimension_semantics<arbitrary>], iteration_bounds = array<i64: 1, 1>, scalar_prefetch = 0 : i64, scratch_operands = 1 : i64, tpu.core_type = #tpu.core_type<tc>, window_params = [{transform_indices = @transform_0, window_bounds = array<i64: 16, 128>}, {transform_indices = @transform_1, window_bounds = array<i64: 16, 128>}, {transform_indices = @transform_2, window_bounds = array<i64: 1, 1>}]} {
    %c0_i32 = arith.constant 0 : i32
    %0 = arith.cmpi eq, %arg1, %c0_i32 : i32
    %1 = arith.extui %0 : i1 to i32
    %c0_i32_0 = arith.constant 0 : i32
    %2 = arith.cmpi ne, %1, %c0_i32_0 : i32
    scf.if %2 {
      %cst_14 = arith.constant 0.000000e+00 : f32
      %25 = vector.broadcast %cst_14 : f32 to vector<8x128xf32>
      %c0_15 = arith.constant 0 : index
      %c0_16 = arith.constant 0 : index
      %26 = vector.load %arg5[%c0_15, %c0_16] : memref<8x128xf32, #tpu.memory_space<vmem>>, vector<8x128xf32>
      tpu.vector_store %arg5[%c0_15, %c0_16], %25 {strides = array<i32>} : memref<8x128xf32, #tpu.memory_space<vmem>>, vector<8x128xf32>,
    } else {
    }
    %c0 = arith.constant 0 : index
    %c0_1 = arith.constant 0 : index
    %3 = vector.load %arg2[%c0, %c0_1] : memref<16x128xf32, #tpu.memory_space<vmem>>, vector<16x128xf32>
    %c0_2 = arith.constant 0 : index
    %c0_3 = arith.constant 0 : index
    %4 = vector.load %arg3[%c0_2, %c0_3] : memref<16x128xf32, #tpu.memory_space<vmem>>, vector<16x128xf32>
    %cst = arith.constant 3.000000e+00 : f32
    %5 = vector.broadcast %cst : f32 to vector<16x128xf32>
    %6 = arith.subf %4, %5 : vector<16x128xf32>
    %cst_4 = arith.constant 6.000000e+00 : f32
    %7 = vector.broadcast %cst_4 : f32 to vector<16x128xf32>
    %8 = arith.mulf %7, %6 : vector<16x128xf32>
    %9 = math.exp %8 : vector<16x128xf32>
    %cst_5 = arith.constant 1.000000e+00 : f32
    %10 = vector.broadcast %cst_5 : f32 to vector<16x128xf32>
    %11 = arith.addf %9, %10 : vector<16x128xf32>
    %cst_6 = arith.constant 5.000000e+00 : f32
    %12 = vector.broadcast %cst_6 : f32 to vector<16x128xf32>
    %13 = arith.minimumf %11, %12 : vector<16x128xf32>
    %14 = arith.subf %4, %3 : vector<16x128xf32>
    %15 = arith.mulf %13, %14 : vector<16x128xf32>
    %16 = arith.mulf %15, %14 : vector<16x128xf32>
    %c0_7 = arith.constant 0 : index
    %c0_8 = arith.constant 0 : index
    %17 = vector.load %arg5[%c0_7, %c0_8] : memref<8x128xf32, #tpu.memory_space<vmem>>, vector<8x128xf32>
    %18 = vector.shape_cast %16 : vector<16x128xf32> to vector<2x8x128xf32>
    %cst_9 = arith.constant dense<0.000000e+00> : vector<8x128xf32>
    %19 = vector.multi_reduction <add>, %18, %cst_9 [0] : vector<2x8x128xf32> to vector<8x128xf32>
    %20 = arith.addf %17, %19 : vector<8x128xf32>
    %c0_10 = arith.constant 0 : index
    %c0_11 = arith.constant 0 : index
    %21 = vector.load %arg5[%c0_10, %c0_11] : memref<8x128xf32, #tpu.memory_space<vmem>>, vector<8x128xf32>
    tpu.vector_store %arg5[%c0_10, %c0_11], %20 {strides = array<i32>} : memref<8x128xf32, #tpu.memory_space<vmem>>, vector<8x128xf32>,
    %c0_i32_12 = arith.constant 0 : i32
    %22 = arith.cmpi eq, %arg1, %c0_i32_12 : i32
    %23 = arith.extui %22 : i1 to i32
    %c0_i32_13 = arith.constant 0 : i32
    %24 = arith.cmpi ne, %23, %c0_i32_13 : i32
    scf.if %24 {
      %c0_14 = arith.constant 0 : index
      %c0_15 = arith.constant 0 : index
      %25 = vector.load %arg5[%c0_14, %c0_15] : memref<8x128xf32, #tpu.memory_space<vmem>>, vector<8x128xf32>
      %26 = vector.shape_cast %25 : vector<8x128xf32> to vector<1x8x128xf32>
      %cst_16 = arith.constant dense<0.000000e+00> : vector<1xf32>
      %27 = vector.multi_reduction <add>, %26, %cst_16 [1, 2] : vector<1x8x128xf32> to vector<1xf32>
      %28 = vector.shape_cast %27 : vector<1xf32> to vector<1x1x1xf32>
      %29 = vector.extract %28[0, 0, 0] : f32 from vector<1x1x1xf32>
      %c0_17 = arith.constant 0 : index
      %c0_18 = arith.constant 0 : index
      %30 = memref.load %arg4[%c0_17, %c0_18] : memref<1x1xf32, #tpu.memory_space<smem>>
      memref.store %29, %arg4[%c0_17, %c0_18] : memref<1x1xf32, #tpu.memory_space<smem>>
    } else {
    }
    return
  }
  func.func @transform_0(%arg0: i32, %arg1: i32) -> (i32, i32) {
    %c1_i32 = arith.constant 1 : i32
    %0 = arith.muli %arg0, %c1_i32 : i32
    %1 = arith.addi %0, %arg1 : i32
    %c0_i32 = arith.constant 0 : i32
    %c0_i32_0 = arith.constant 0 : i32
    return %1, %c0_i32 : i32, i32
  }
  func.func @transform_1(%arg0: i32, %arg1: i32) -> (i32, i32) {
    %c1_i32 = arith.constant 1 : i32
    %0 = arith.muli %arg0, %c1_i32 : i32
    %1 = arith.addi %0, %arg1 : i32
    %c0_i32 = arith.constant 0 : i32
    %c0_i32_0 = arith.constant 0 : i32
    return %1, %c0_i32 : i32, i32
  }
  func.func @transform_2(%arg0: i32, %arg1: i32) -> (i32, i32) {
    %c0_i32 = arith.constant 0 : i32
    %c0_i32_0 = arith.constant 0 : i32
    return %arg0, %c0_i32 : i32, i32
  }
}

</mosaic_0001>

<llo_original>
// kernel: tpu_custom_call.1
$region0: #{tpu_custom_call.1}
  #allocation0 [shape = 'u32[]', space=smem, size = 0x4, offset = 0x4, fixed_abs, tag = 'smem constant byte address 0x4 - core index']
  #allocation1 [shape = 'u32[144,128]{1,0:T(1,128)}', space=vmem, size = 0x12000, scoped, tag = 'internal scratch']
  #allocation2 [shape = 'f32[8,128]{1,0:T(8,128)}', space=vmem, size = 0x1000, scoped, tag = 'scratch operand']
  %s0 = inlined_call_operand.hbm [shape: f32[16,128], index: 0, kind: input, shape index: {}]
  %s1 = inlined_call_operand.hbm [shape: f32[16,128], index: 1, kind: input, shape index: {}]
  %s2 = inlined_call_operand.hbm [shape: f32[1,1], index: 2, kind: output, shape index: {}]
  %s3 = sld [smem:[#allocation0]]
  $region34: #{tpu_custom_call.1} parent=0
    _
  %s5 = ssub.s32 1, %s3
  %s6 = scalar_select 0, %s5, %s3
  $region1: #{tpu_custom_call.1} parent=0
    #allocation3 [shape = 'u8[8192]{0}', space=vmem, size = 0x2000, scoped, tag = 'input window, operand 0, single buffered']
    #allocation4 [shape = 's32[1]{0}', space=sflag, size = 0x4, scoped, tag = 'scoped memory for tpu_custom_call.1']
    #allocation5 [shape = 's32[1]{0}', space=sflag, size = 0x4, scoped, tag = 'scoped memory for tpu_custom_call.1']
    #allocation6 [shape = 'u8[8192]{0}', space=vmem, size = 0x2000, scoped, tag = 'input window, operand 1, single buffered']
    #allocation7 [shape = 's32[1]{0}', space=sflag, size = 0x4, scoped, tag = 'scoped memory for tpu_custom_call.1']
    #allocation8 [shape = 'u8[512]{0}', space=smem, size = 0x200, scoped, tag = 'output window, operand 0, single buffered']
    %7 = vsyncpa [#allocation4], 0
    %8 = vsyncpa [#allocation7], 0
    %9 = vsyncpa [#allocation5], 0
    // Predicated region
    $region2: #{tpu_custom_call.1} parent=1 // pred_check
      _
    $region3: #{tpu_custom_call.1} parent=1 // pred_check_branch
      %11 = sbr.rel (0) target = $region5
    $region4: #{tpu_custom_call.1} parent=1 // pred_region
      %s12 = sadd.s32 0, 0
      %s13 = smul.u32 2, %s12
      %s15 = ssub.s32 256, 256
      %16 = vsyncadd [#allocation4], %s15
      %s17 = smul.addr %s13, 128
      %s18 = scalar_lea.hbm %s0, %s17
      %s19 = sshll.u32 [#allocation3], 4
      %s20 = int_to_ptr.vmem [resolvable:$true] %s19
      %25 = dma.hbm_to_vmem [thread:$0]  %s18, 256, %s20, [#allocation4], 128, 128, 8
    $region5: #{tpu_custom_call.1} parent=1 // pred_fallthru
      _
    // Predicated region
    $region6: #{tpu_custom_call.1} parent=1 // pred_check
      _
    $region7: #{tpu_custom_call.1} parent=1 // pred_check_branch
      %27 = sbr.rel (0) target = $region9
    $region8: #{tpu_custom_call.1} parent=1 // pred_region
      %s28 = sadd.s32 0, 0
      %s29 = smul.u32 2, %s28
      %s31 = ssub.s32 256, 256
      %32 = vsyncadd [#allocation7], %s31
      %s33 = smul.addr %s29, 128
      %s34 = scalar_lea.hbm %s1, %s33
      %s35 = sshll.u32 [#allocation6], 4
      %s36 = int_to_ptr.vmem [resolvable:$true] %s35
      %41 = dma.hbm_to_vmem [thread:$0]  %s34, 256, %s36, [#allocation7], 128, 128, 8
    $region9: #{tpu_custom_call.1} parent=1 // pred_fallthru
      _
    // Predicated region
    $region10: #{tpu_custom_call.1} parent=1 // pred_check
      _
    $region11: #{tpu_custom_call.1} parent=1 // pred_check_branch
      %43 = sbr.rel (0) target = $region13
    $region12: #{tpu_custom_call.1} parent=1 // pred_region
      %44 = dma.done [#allocation4], 256
    $region13: #{tpu_custom_call.1} parent=1 // pred_fallthru
      _
    // Predicated region
    $region14: #{tpu_custom_call.1} parent=1 // pred_check
      _
    $region15: #{tpu_custom_call.1} parent=1 // pred_check_branch
      %46 = sbr.rel (0) target = $region17
    $region16: #{tpu_custom_call.1} parent=1 // pred_region
      %47 = dma.done [#allocation7], 256
    $region17: #{tpu_custom_call.1} parent=1 // pred_fallthru
      _
    %s48 = sadd.s32 0, 0
    %s49 = smul.u32 2, %s48
    %s50 = sadd.s32 0, 0
    %s51 = smul.u32 2, %s50
    %p52 = scmp.eq.s32.totalorder 0, 0
    // Predicated region
    $region18: #{tpu_custom_call.1} parent=1 // pred_check
      %p53 = pneg %p52
    $region19: #{tpu_custom_call.1} parent=1 // pred_check_branch
      %55 = sbr.rel (%p53) target = $region21
    $region20: #{tpu_custom_call.1} parent=1 // pred_region
      %56 = vst [vmem:[#allocation2] sm:$0xff] 0.0
    $region21: #{tpu_custom_call.1} parent=1 // pred_fallthru
      _
    %v57 = vld [vmem:[#allocation3] sm:$0xff]
    %v58 = vld [vmem:[#allocation3 + $0x8] sm:$0xff]
    %v59 = vld [vmem:[#allocation6] sm:$0xff]
    %v60 = vld [vmem:[#allocation6 + $0x8] sm:$0xff]
    %v61 = vsub.f32 %v59, 3.0
    %v62 = vsub.f32 %v60, 3.0
    %v63 = vmul.f32 %v61, 6.0
    %v64 = vmul.f32 %v62, 6.0
    %v65 = vmul.f32 %v63, 1.442695
    %v66 = vpow.pop %v65
    %v67 = vmul.f32 %v64, 1.442695
    %v68 = vpow.pop %v67
    %v69 = vadd.f32 %v66, 1.0
    %v70 = vadd.f32 %v68, 1.0
    %v71 = vmin.f32 %v69, 5.0
    %v72 = vmin.f32 %v70, 5.0
    %v73 = vsub.f32 %v59, %v57
    %v74 = vsub.f32 %v60, %v58
    %v75 = vmul.f32 %v71, %v73
    %v76 = vmul.f32 %v72, %v74
    %v77 = vmul.f32 %v75, %v73
    %v78 = vmul.f32 %v76, %v74
    %v79 = vld [vmem:[#allocation2] sm:$0xff]
    %v80 = vadd.f32 %v77, %v78
    %v81 = vadd.f32 %v79, %v80
    %82 = vst [vmem:[#allocation2] sm:$0xff] %v81
    // Predicated region
    $region22: #{tpu_custom_call.1} parent=1 // pred_check
      %p83 = pneg %p52
    $region23: #{tpu_custom_call.1} parent=1 // pred_check_branch
      %85 = sbr.rel (%p83) target = $region25
    $region24: #{tpu_custom_call.1} parent=1 // pred_region
      %v86 = vld [vmem:[#allocation2] sm:$0xff]
      %87 = vadd.xlane.f32.xlu0 %v86
      %v88 = vpop.xlane.xlu0 %87
      %v89 = vrot.slane %v88, 4
      %v90 = vadd.f32 %v88, %v89
      %v91 = vrot.slane %v90, 2
      %v92 = vadd.f32 %v90, %v91
      %v93 = vrot.slane %v92, 1
      %v94 = vadd.f32 %v92, %v93
      %s95 = vtos %v94
      %s96 = scalar_lea.smem [#allocation8], 0
      %97 = sst [smem:[%s96]] %s95
    $region25: #{tpu_custom_call.1} parent=1 // pred_fallthru
      _
    // Predicated region
    $region26: #{tpu_custom_call.1} parent=1 // pred_check
      _
    $region27: #{tpu_custom_call.1} parent=1 // pred_check_branch
      %99 = sbr.rel (0) target = $region29
    $region28: #{tpu_custom_call.1} parent=1 // pred_region
      %s101 = ssub.s32 16, 16
      %102 = vsyncadd [#allocation5], %s101
      %105 = dma.smem_to_hbm [#allocation8], 16, %s2, [#allocation5]
    $region29: #{tpu_custom_call.1} parent=1 // pred_fallthru
      _
    // Predicated region
    $region30: #{tpu_custom_call.1} parent=1 // pred_check
      _
    $region31: #{tpu_custom_call.1} parent=1 // pred_check_branch
      %107 = sbr.rel (0) target = $region33
    $region32: #{tpu_custom_call.1} parent=1 // pred_region
      %108 = dma.done [#allocation5], 16
    $region33: #{tpu_custom_call.1} parent=1 // pred_fallthru
      _
    %109 = sfence
    %110 = vsyncpa [#allocation4], 1
    %111 = vsyncpa [#allocation7], 1
    %112 = vsyncpa [#allocation5], 1

</llo_original>
